<compile_context>
chip_gen: v5e
topology: v5e:2x2
jax: 0.10.0
libtpu: 0.0.40
codegen_flags: <defaults>
</compile_context>

<pallas_src>
import jax
import jax.numpy as jnp
from jax.experimental import pallas as pl
from jax.experimental.pallas import tpu as pltpu


def ent_init_kernel(feat_ref, emb_ref, o_ref):
    """One grid step: full-width matmul + row-sum normalization for a row tile."""
    a = feat_ref[...]                                          # (tm, V)
    num = jnp.dot(a, emb_ref[...],                             # (tm, Dp), MXU, f32 acc
                  preferred_element_type=jnp.float32)
    denom = jnp.sum(a.astype(jnp.float32), axis=-1, keepdims=True) + 1e-6
    inv = pl.reciprocal(denom, approx=False)                   # (tm, 1), EUP
    o_ref[...] = (num * inv).astype(o_ref.dtype)


def _round_up(x, m):
    return ((x + m - 1) // m) * m


def ent_init_only_name(feat, pt_emb, *, tm=1024, use_bf16=False):
    """feat: [N, V] float32, pt_emb: [V, D] float32 -> [N, D] float32."""
    N, V = feat.shape
    V2, D = pt_emb.shape
    assert V == V2

    # Lane-dense output: pad the (small) embedding to a multiple-of-128 width;
    # zero padding columns are sliced off the output below. (If V itself is not
    # a multiple of 128 the kernel is still correct: full-extent blocks are
    # allowed; only feat-load lane density is affected.)
    Dp = _round_up(D, 128)
    if Dp != D:
        pt_emb = jnp.pad(pt_emb, ((0, 0), (0, Dp - D)))

    if use_bf16:
        # TODO(synk): bf16 streaming (~2x HBM traffic win) costs ~1e-3 rel err.
        feat = feat.astype(jnp.bfloat16)
        pt_emb = pt_emb.astype(jnp.bfloat16)
    in_bytes = jnp.dtype(feat.dtype).itemsize
    out_bytes = 4  # output stays f32

    # Per-generation VMEM limit: physical capacity minus headroom for Mosaic's
    # internal scratch; the tile-selection budget equals the compiler limit.
    try:
        vmem_cap = int(pltpu.get_tpu_info().vmem_capacity_bytes)
    except Exception:
        vmem_cap = 64 * 1024 * 1024
    vmem_limit = max(vmem_cap - 16 * 1024 * 1024, 32 * 1024 * 1024)
    vmem_budget = vmem_limit

    # Conservative footprint: double-buffered feat + out tiles, 2x resident emb
    # (in case the single-buffer request falls back to the default).
    def footprint(tm_):
        return (2 * tm_ * V * in_bytes
                + 2 * tm_ * Dp * out_bytes
                + 2 * V * Dp * in_bytes)

    # Largest row tile that fits the budget: step down by 256, then (rarely,
    # for huge V) halve; keep tm a multiple of 8 for the (8,128) layout rule.
    tm = max(8, _round_up(tm, 8))
    while tm > 256 and footprint(tm) > vmem_budget:
        tm -= 256
    while tm > 8 and footprint(tm) > vmem_budget:
        tm = max(8, ((tm // 2) // 8) * 8)

    # Clamp to the problem size; on v7x keep >= 2 tiles so the "parallel" row
    # axis can be sharded across both TensorCores.
    tm = min(tm, _round_up(N, 8))
    if N >= 16:
        tm = min(tm, _round_up(pl.cdiv(N, 2), 8))
    tm = max(tm, 8)

    grid = (pl.cdiv(N, tm),)  # ragged last block handled by Pallas; no pad copy

    def build(emb_spec):
        return pl.pallas_call(
            ent_init_kernel,
            out_shape=jax.ShapeDtypeStruct((N, Dp), jnp.float32),
            grid_spec=pltpu.PrefetchScalarGridSpec(
                num_scalar_prefetch=0,
                grid=grid,
                in_specs=[
                    # feat: streamed from HBM exactly once, one (tm, V) tile/step.
                    pl.BlockSpec((tm, V), lambda i: (i, 0)),
                    # pt_emb: constant block index -> VMEM-resident, DMA'd once.
                    emb_spec,
                ],
                out_specs=pl.BlockSpec((tm, Dp), lambda i: (i, 0)),
            ),
            compiler_params=pltpu.CompilerParams(
                dimension_semantics=("parallel",),
                vmem_limit_bytes=vmem_limit,
            ),
        )

    try:
        # Constant index_map never needs a second buffer: single-buffer the emb.
        out = build(pl.BlockSpec((V, Dp), lambda i: (0, 0),
                                 pipeline_mode=pl.Buffered(1)))(feat, pt_emb)
    except Exception:
        # Fallback if this Pallas/Mosaic version rejects pipeline_mode here.
        out = build(pl.BlockSpec((V, Dp), lambda i: (0, 0)))(feat, pt_emb)

    return out if Dp == D else out[:, :D]


if __name__ == "__main__":
    key = jax.random.PRNGKey(0)
    k_feat, k_emb = jax.random.split(key)

    # Small, module-consistent shapes:
    #   N nodes = 128, alarm/kpi vocab V = 256, pretrained embedding dim D = 128
    N, V, D = 128, 256, 128

    # Node alarm/kpi feature matrix (non-negative count/indicator-like features).
    feat = jax.random.uniform(k_feat, (N, V), dtype=jnp.float32)
    # Deterministic "pretrained" embedding (stand-in for torch.load).
    pt_emb = jax.random.normal(k_emb, (V, D), dtype=jnp.float32) * 0.02

    out = ent_init_only_name(feat, pt_emb)
    out = jax.block_until_ready(out)

    # Reference check in plain JAX.
    ref = (feat @ pt_emb) / (jnp.sum(feat, axis=-1, keepdims=True) + 1e-6)
    assert out.shape == (N, D)
    assert jnp.allclose(out, ref, atol=1e-5, rtol=1e-5)

    print("KERNEL_OK")
</pallas_src>

<mosaic_0001>
module attributes {stable_mosaic.version = 11 : i64} {
  func.func @ent_init_kernel(%arg0: i32, %arg1: memref<64x256xf32, #tpu.memory_space<vmem>>, %arg2: memref<256x128xf32, #tpu.memory_space<vmem>>, %arg3: memref<64x128xf32, #tpu.memory_space<vmem>>) attributes {dimension_semantics = [#tpu.dimension_semantics<parallel>], iteration_bounds = array<i64: 2>, scalar_prefetch = 0 : i64, scratch_operands = 0 : i64, tpu.core_type = #tpu.core_type<tc>, window_params = [{transform_indices = @transform_0, window_bounds = array<i64: 64, 256>}, {pipeline_mode = #tpu.pipeline_mode<synchronous>, transform_indices = @transform_1, window_bounds = array<i64: 256, 128>}, {transform_indices = @transform_2, window_bounds = array<i64: 64, 128>}]} {
    %c0 = arith.constant 0 : index
    %c0_0 = arith.constant 0 : index
    %0 = vector.load %arg1[%c0, %c0_0] : memref<64x256xf32, #tpu.memory_space<vmem>>, vector<64x256xf32>
    %c0_1 = arith.constant 0 : index
    %c0_2 = arith.constant 0 : index
    %1 = vector.load %arg2[%c0_1, %c0_2] : memref<256x128xf32, #tpu.memory_space<vmem>>, vector<256x128xf32>
    %cst = arith.constant dense<0.000000e+00> : vector<64x128xf32>
    %2 = tpu.matmul %0, %1, %cst {dimension_numbers = #tpu.dot_dimension_numbers<[1], [0], [0], [1], [0, 0, 1, 1], [], []>} : vector<64x256xf32>, vector<256x128xf32>, vector<64x128xf32> -> vector<64x128xf32>
    %cst_3 = arith.constant dense<0.000000e+00> : vector<64xf32>
    %3 = vector.multi_reduction <add>, %0, %cst_3 [1] : vector<64x256xf32> to vector<64xf32>
    %4 = vector.shape_cast %3 : vector<64xf32> to vector<64x1xf32>
    %cst_4 = arith.constant 9.99999997E-7 : f32
    %5 = vector.broadcast %cst_4 : f32 to vector<64x1xf32>
    %6 = arith.addf %4, %5 : vector<64x1xf32>
    %7 = tpu.reciprocal %6 : vector<64x1xf32> -> vector<64x1xf32>
    %8 = vector.broadcast %7 : vector<64x1xf32> to vector<64x128xf32>
    %9 = arith.mulf %2, %8 : vector<64x128xf32>
    %c0_5 = arith.constant 0 : index
    %c0_6 = arith.constant 0 : index
    %10 = vector.load %arg3[%c0_5, %c0_6] : memref<64x128xf32, #tpu.memory_space<vmem>>, vector<64x128xf32>
    tpu.vector_store %arg3[%c0_5, %c0_6], %9 {strides = array<i32>} : memref<64x128xf32, #tpu.memory_space<vmem>>, vector<64x128xf32>,
    return
  }
  func.func @transform_0(%arg0: i32) -> (i32, i32) {
    %c0_i32 = arith.constant 0 : i32
    %c0_i32_0 = arith.constant 0 : i32
    return %arg0, %c0_i32 : i32, i32
  }
  func.func @transform_1(%arg0: i32) -> (i32, i32) {
    %c0_i32 = arith.constant 0 : i32
    %c0_i32_0 = arith.constant 0 : i32
    %c0_i32_1 = arith.constant 0 : i32
    return %c0_i32, %c0_i32_0 : i32, i32
  }
  func.func @transform_2(%arg0: i32) -> (i32, i32) {
    %c0_i32 = arith.constant 0 : i32
    %c0_i32_0 = arith.constant 0 : i32
    return %arg0, %c0_i32 : i32, i32
  }
}

module attributes {stable_mosaic.version = 11 : i64} {
  func.func @ent_init_kernel(%arg0: i32, %arg1: memref<64x256xf32, #tpu.memory_space<vmem>>, %arg2: memref<256x128xf32, #tpu.memory_space<vmem>>, %arg3: memref<64x128xf32, #tpu.memory_space<vmem>>) attributes {dimension_semantics = [#tpu.dimension_semantics<parallel>], iteration_bounds = array<i64: 2>, scalar_prefetch = 0 : i64, scratch_operands = 0 : i64, tpu.core_type = #tpu.core_type<tc>, window_params = [{transform_indices = @transform_0, window_bounds = array<i64: 64, 256>}, {pipeline_mode = #tpu.pipeline_mode<synchronous>, transform_indices = @transform_1, window_bounds = array<i64: 256, 128>}, {transform_indices = @transform_2, window_bounds = array<i64: 64, 128>}]} {
    %c0 = arith.constant 0 : index
    %c0_0 = arith.constant 0 : index
    %0 = vector.load %arg1[%c0, %c0_0] : memref<64x256xf32, #tpu.memory_space<vmem>>, vector<64x256xf32>
    %c0_1 = arith.constant 0 : index
    %c0_2 = arith.constant 0 : index
    %1 = vector.load %arg2[%c0_1, %c0_2] : memref<256x128xf32, #tpu.memory_space<vmem>>, vector<256x128xf32>
    %cst = arith.constant dense<0.000000e+00> : vector<64x128xf32>
    %2 = tpu.matmul %0, %1, %cst {dimension_numbers = #tpu.dot_dimension_numbers<[1], [0], [0], [1], [0, 0, 1, 1], [], []>} : vector<64x256xf32>, vector<256x128xf32>, vector<64x128xf32> -> vector<64x128xf32>
    %cst_3 = arith.constant dense<0.000000e+00> : vector<64xf32>
    %3 = vector.multi_reduction <add>, %0, %cst_3 [1] : vector<64x256xf32> to vector<64xf32>
    %4 = vector.shape_cast %3 : vector<64xf32> to vector<64x1xf32>
    %cst_4 = arith.constant 9.99999997E-7 : f32
    %5 = vector.broadcast %cst_4 : f32 to vector<64x1xf32>
    %6 = arith.addf %4, %5 : vector<64x1xf32>
    %7 = tpu.reciprocal %6 : vector<64x1xf32> -> vector<64x1xf32>
    %8 = vector.broadcast %7 : vector<64x1xf32> to vector<64x128xf32>
    %9 = arith.mulf %2, %8 : vector<64x128xf32>
    %c0_5 = arith.constant 0 : index
    %c0_6 = arith.constant 0 : index
    %10 = vector.load %arg3[%c0_5, %c0_6] : memref<64x128xf32, #tpu.memory_space<vmem>>, vector<64x128xf32>
    tpu.vector_store %arg3[%c0_5, %c0_6], %9 {strides = array<i32>} : memref<64x128xf32, #tpu.memory_space<vmem>>, vector<64x128xf32>,
    return
  }
  func.func @transform_0(%arg0: i32) -> (i32, i32) {
    %c0_i32 = arith.constant 0 : i32
    %c0_i32_0 = arith.constant 0 : i32
    return %arg0, %c0_i32 : i32, i32
  }
  func.func @transform_1(%arg0: i32) -> (i32, i32) {
    %c0_i32 = arith.constant 0 : i32
    %c0_i32_0 = arith.constant 0 : i32
    %c0_i32_1 = arith.constant 0 : i32
    return %c0_i32, %c0_i32_0 : i32, i32
  }
  func.func @transform_2(%arg0: i32) -> (i32, i32) {
    %c0_i32 = arith.constant 0 : i32
    %c0_i32_0 = arith.constant 0 : i32
    return %arg0, %c0_i32 : i32, i32
  }
}

</mosaic_0001>

<llo_original>
// kernel: tpu_custom_call.1
$region0: #{tpu_custom_call.1}
  #allocation0 [shape = 'u32[]', space=smem, size = 0x4, offset = 0x4, fixed_abs, tag = 'smem constant byte address 0x4 - core index']
  #allocation1 [shape = 'u32[72,128]{1,0:T(1,128)}', space=vmem, size = 0x9000, scoped, tag = 'internal scratch']
  %s0 = inlined_call_operand.hbm [shape: f32[128,256], index: 0, kind: input, shape index: {}]
  %s1 = inlined_call_operand.hbm [shape: f32[256,128], index: 1, kind: input, shape index: {}]
  %s2 = inlined_call_operand.hbm [shape: f32[128,128], index: 2, kind: output, shape index: {}]
  %s3 = sld [smem:[#allocation0]]
  $region49: #{tpu_custom_call.1} parent=0
    _
  %s5 = ssub.s32 1, %s3
  %s6 = scalar_select 0, %s5, %s3
  $region1: #{tpu_custom_call.1} parent=0
    #allocation2 [shape = 'u8[131072]{0}', space=vmem, size = 0x20000, scoped, tag = 'input window, operand 0']
    #allocation3 [shape = 's32[2]{0}', space=sflag, size = 0x8, scoped, tag = 'scoped memory for tpu_custom_call.1']
    #allocation4 [shape = 's32[2]{0}', space=sflag, size = 0x8, scoped, tag = 'scoped memory for tpu_custom_call.1']
    #allocation5 [shape = 'u8[131072]{0}', space=vmem, size = 0x20000, scoped, tag = 'input window, operand 1, single buffered']
    #allocation6 [shape = 's32[1]{0}', space=sflag, size = 0x4, scoped, tag = 'scoped memory for tpu_custom_call.1']
    #allocation7 [shape = 'u8[65536]{0}', space=vmem, size = 0x10000, scoped, tag = 'output window, operand 0']
    %7 = vsyncpa [#allocation3], 0
    %s8 = scalar_lea.sflag [#allocation3], 1
    %9 = vsyncpa %s8, 0
    %10 = vsyncpa [#allocation6], 0
    %11 = vsyncpa [#allocation4], 0
    %s12 = scalar_lea.sflag [#allocation4], 1
    %13 = vsyncpa %s12, 0
    loop: start=0, step=1, limit=4
    $region2: #{tpu_custom_call.1} parent=1 // loop_pre_header
      _
    $region3: #{tpu_custom_call.1} parent=1 // loop_header
      %s15 = sphi 0, %s19
      %p16 = scmp.ge.s32.totalorder %s15, 4
      %s25 = sphi 0, %s27
      %s28 = sphi 0, %s25
      %s29 = sphi 0, %s28
      %s45 = sphi 0, %s29
      %s49 = sphi 0, %s49
      %s51 = sphi 0, %s49
      %s52 = sphi 0, %s51
      %s66 = sphi 0, %s52
      %s72 = sphi 0, %s74
      %s75 = sphi 0, %s72
      %s76 = sphi 0, %s75
      %s92 = sphi 0, %s76
    $region4: #{tpu_custom_call.1} parent=1 // loop_header_branch
      %18 = sbr.rel (%p16) target = $region8
    $region5: #{tpu_custom_call.1} parent=1 // loop_body
      %s20 = ssub.s32 %s15, 1
      %s21 = ssub.s32 %s15, 2
      %s22 = sadd.s32 %s15, 1
      %s23 = ssub.s32 %s15, %s22
      %p24 = scmp.eq.s32.totalorder %s23, 0
      %s26 = sadd.s32 %s25, 1
      %s27 = scalar_select %p24, %s25, %s26
      %p30 = pneg %p24
      %p31 = scmp.eq.s32.totalorder %s15, 1
      %p32 = por %p30, %p31
      %p33 = scmp.ne.s32.totalorder %s25, %s28
      %p34 = scmp.eq.s32.totalorder %s15, 0
      %p35 = por %p33, %p34
      %p36 = scmp.ne.s32.totalorder %s25, %s28
      %p37 = scmp.eq.s32.totalorder %s20, 1
      %p38 = por %p36, %p37
      %p39 = scmp.ne.s32.totalorder %s28, %s29
      %p40 = scmp.eq.s32.totalorder %s20, 0
      %p41 = por %p39, %p40
      %p42 = scmp.ne.s32.totalorder %s28, %s29
      %p43 = scmp.eq.s32.totalorder %s21, 1
      %p44 = por %p42, %p43
      %p46 = scmp.ne.s32.totalorder %s29, %s45
      %p47 = scmp.eq.s32.totalorder %s21, 0
      %p48 = por %p46, %p47
      %s50 = sadd.s32 %s49, 1
      %p53 = scmp.eq.s32.totalorder %s15, 1
      %p54 = scmp.ne.s32.totalorder %s49, %s51
      %p55 = scmp.eq.s32.totalorder %s15, 0
      %p56 = por %p54, %p55
      %p57 = scmp.ne.s32.totalorder %s49, %s51
      %p58 = scmp.eq.s32.totalorder %s20, 1
      %p59 = por %p57, %p58
      %p60 = scmp.ne.s32.totalorder %s51, %s52
      %p61 = scmp.eq.s32.totalorder %s20, 0
      %p62 = por %p60, %p61
      %p63 = scmp.ne.s32.totalorder %s51, %s52
      %p64 = scmp.eq.s32.totalorder %s21, 1
      %p65 = por %p63, %p64
      %p67 = scmp.ne.s32.totalorder %s52, %s66
      %p68 = scmp.eq.s32.totalorder %s21, 0
      %p69 = por %p67, %p68
      %s70 = ssub.s32 %s15, %s22
      %p71 = scmp.eq.s32.totalorder %s70, 0
      %s73 = sadd.s32 %s72, 1
      %s74 = scalar_select %p71, %s72, %s73
      %p77 = pneg %p71
      %p78 = scmp.eq.s32.totalorder %s15, 1
      %p79 = por %p77, %p78
      %p80 = scmp.ne.s32.totalorder %s72, %s75
      %p81 = scmp.eq.s32.totalorder %s15, 0
      %p82 = por %p80, %p81
      %p83 = scmp.ne.s32.totalorder %s72, %s75
      %p84 = scmp.eq.s32.totalorder %s20, 1
      %p85 = por %p83, %p84
      %p86 = scmp.ne.s32.totalorder %s75, %s76
      %p87 = scmp.eq.s32.totalorder %s20, 0
      %p88 = por %p86, %p87
      %p89 = scmp.ne.s32.totalorder %s75, %s76
      %p90 = scmp.eq.s32.totalorder %s21, 1
      %p91 = por %p89, %p90
      %p93 = scmp.ne.s32.totalorder %s76, %s92
      %p94 = scmp.eq.s32.totalorder %s21, 0
      %p95 = por %p93, %p94
      %p96 = scmp.le.s32.totalorder 1, %s15
      %p97 = scmp.lt.s32.totalorder %s15, 3
      %p98 = pnand %p96, %p97
      %p99 = pneg %p98
      // Predicated region
      $region9: #{tpu_custom_call.1} parent=5 // pred_check
        _
      $region10: #{tpu_custom_call.1} parent=5 // pred_check_branch
        %101 = sbr.rel (%p98) target = $region12
      $region11: #{tpu_custom_call.1} parent=5 // pred_region
        %s102 = ssub.s32 %s15, 1
        // Predicated region
        $region13: #{tpu_custom_call.1} parent=11 // pred_check
          %p103 = pneg %p62
        $region14: #{tpu_custom_call.1} parent=11 // pred_check_branch
          %105 = sbr.rel (%p103) target = $region16
        $region15: #{tpu_custom_call.1} parent=11 // pred_region
          %107 = vsyncadd [#allocation6], 0
          %s108 = sshll.u32 %s1, 4
          %s109 = int_to_ptr.hbm [resolvable:$true] %s108
          %s110 = sshll.u32 [#allocation5], 4
          %s111 = int_to_ptr.vmem [resolvable:$true] %s110
          %116 = dma.hbm_to_vmem [thread:$0]  %s109, 4096, %s111, [#allocation6], 128, 128, 8
        $region16: #{tpu_custom_call.1} parent=11 // pred_fallthru
          _
      $region12: #{tpu_custom_call.1} parent=5 // pred_fallthru
        _
      %p117 = scmp.lt.s32.totalorder %s15, 2
      // Predicated region
      $region17: #{tpu_custom_call.1} parent=5 // pred_check
        %p118 = pneg %p117
      $region18: #{tpu_custom_call.1} parent=5 // pred_check_branch
        %120 = sbr.rel (%p118) target = $region20
      $region19: #{tpu_custom_call.1} parent=5 // pred_region
        // Predicated region
        $region21: #{tpu_custom_call.1} parent=19 // pred_check
          %p121 = pneg %p35
        $region22: #{tpu_custom_call.1} parent=19 // pred_check_branch
          %123 = sbr.rel (%p121) target = $region24
        $region23: #{tpu_custom_call.1} parent=19 // pred_region
          %s124 = sand.u32 %s25, 1
          %s125 = scalar_lea.sflag [#allocation3], %s124
          %s126 = sand.u32 %s25, 1
          %s127 = smul.addr %s126, 128
          %s128 = scalar_lea.vmem [#allocation2], %s127
          %s129 = smul.u32 8, %s15
          %131 = vsyncadd %s125, 0
          %s132 = smul.addr %s129, 2
          %s133 = smul.addr %s132, 8
          %s134 = scalar_lea.hbm %s0, %s133
          %s135 = sshll.u32 %s134, 4
          %s136 = int_to_ptr.hbm [resolvable:$true] %s135
          %s137 = sshll.u32 %s128, 4
          %s138 = int_to_ptr.vmem [resolvable:$true] %s137
          %143 = dma.hbm_to_vmem [thread:$0]  %s136, 2048, %s138, %s125, 256, 256, 16
        $region24: #{tpu_custom_call.1} parent=19 // pred_fallthru
          _
      $region20: #{tpu_custom_call.1} parent=5 // pred_fallthru
        _
      %p144 = scmp.le.s32.totalorder 1, %s15
      %p145 = scmp.lt.s32.totalorder %s15, 3
      %p146 = pnand %p144, %p145
      %p147 = pneg %p146
      // Predicated region
      $region25: #{tpu_custom_call.1} parent=5 // pred_check
        _
      $region26: #{tpu_custom_call.1} parent=5 // pred_check_branch
        %149 = sbr.rel (%p146) target = $region28
      $region27: #{tpu_custom_call.1} parent=5 // pred_region
        %s150 = ssub.s32 %s15, 1
        %s151 = sand.u32 %s28, 1
        %s152 = scalar_lea.sflag [#allocation3], %s151
        %s153 = sand.u32 %s28, 1
        %s154 = smul.addr %s153, 128
        %s155 = scalar_lea.vmem [#allocation2], %s154
        // Predicated region
        $region29: #{tpu_custom_call.1} parent=27 // pred_check
          %p156 = pneg %p41
        $region30: #{tpu_custom_call.1} parent=27 // pred_check_branch
          %158 = sbr.rel (%p156) target = $region32
        $region31: #{tpu_custom_call.1} parent=27 // pred_region
          %160 = dma.done %s152, 2048
        $region32: #{tpu_custom_call.1} parent=27 // pred_fallthru
          _
        // Predicated region
        $region33: #{tpu_custom_call.1} parent=27 // pred_check
          %p161 = pneg %p62
        $region34: #{tpu_custom_call.1} parent=27 // pred_check_branch
          %163 = sbr.rel (%p161) target = $region36
        $region35: #{tpu_custom_call.1} parent=27 // pred_region
          %165 = dma.done [#allocation6], 4096
        $region36: #{tpu_custom_call.1} parent=27 // pred_fallthru
          _
        %s166 = sand.u32 %s28, 1
        %s167 = scalar_lea.sflag [#allocation3], %s166
        %s168 = sand.u32 %s28, 1
        %s169 = smul.addr %s168, 128
        %s170 = scalar_lea.vmem [#allocation2], %s169
        %p171 = pneg %p41
        %p172 = pneg %p38
        %p173 = pneg %p62
        %p174 = pneg %p59
        %p175 = pneg %p88
        %p176 = pneg %p85
        %s177 = sand.u32 %s75, 1
        %s178 = scalar_lea.sflag [#allocation4], %s177
        %s179 = sand.u32 %s75, 1
        %s180 = smul.addr %s179, 64
        %s181 = scalar_lea.vmem [#allocation7], %s180
        %s182 = smul.u32 8, %s20
        %s183 = smul.u32 8, %s20
        %v184 = vld [vmem:[%s155] sm:$0xff]
        %v185 = vld [vmem:[%s155 + $0x8] sm:$0xff]
        %v186 = vld [vmem:[%s155 + $0x10] sm:$0xff]
        %v187 = vld [vmem:[%s155 + $0x18] sm:$0xff]
        %v188 = vld [vmem:[%s155 + $0x20] sm:$0xff]
        %v189 = vld [vmem:[%s155 + $0x28] sm:$0xff]
        %v190 = vld [vmem:[%s155 + $0x30] sm:$0xff]
        %v191 = vld [vmem:[%s155 + $0x38] sm:$0xff]
        %v192 = vld [vmem:[%s155 + $0x40] sm:$0xff]
        %v193 = vld [vmem:[%s155 + $0x48] sm:$0xff]
        %v194 = vld [vmem:[%s155 + $0x50] sm:$0xff]
        %v195 = vld [vmem:[%s155 + $0x58] sm:$0xff]
        %v196 = vld [vmem:[%s155 + $0x60] sm:$0xff]
        %v197 = vld [vmem:[%s155 + $0x68] sm:$0xff]
        %v198 = vld [vmem:[%s155 + $0x70] sm:$0xff]
        %v199 = vld [vmem:[%s155 + $0x78] sm:$0xff]
        %v200 = vld [vmem:[#allocation5] sm:$0xff]
        %v201 = vld [vmem:[#allocation5 + $0x8] sm:$0xff]
        %v202 = vld [vmem:[#allocation5 + $0x10] sm:$0xff]
        %v203 = vld [vmem:[#allocation5 + $0x18] sm:$0xff]
        %v204 = vld [vmem:[#allocation5 + $0x20] sm:$0xff]
        %v205 = vld [vmem:[#allocation5 + $0x28] sm:$0xff]
        %v206 = vld [vmem:[#allocation5 + $0x30] sm:$0xff]
        %v207 = vld [vmem:[#allocation5 + $0x38] sm:$0xff]
        %v208 = vld [vmem:[#allocation5 + $0x40] sm:$0xff]
        %v209 = vld [vmem:[#allocation5 + $0x48] sm:$0xff]
        %v210 = vld [vmem:[#allocation5 + $0x50] sm:$0xff]
        %v211 = vld [vmem:[#allocation5 + $0x58] sm:$0xff]
        %v212 = vld [vmem:[#allocation5 + $0x60] sm:$0xff]
        %v213 = vld [vmem:[#allocation5 + $0x68] sm:$0xff]
        %v214 = vld [vmem:[#allocation5 + $0x70] sm:$0xff]
        %v215 = vld [vmem:[#allocation5 + $0x78] sm:$0xff]
        %v216 = vld [vmem:[#allocation5 + $0x80] sm:$0xff]
        %v217 = vld [vmem:[#allocation5 + $0x88] sm:$0xff]
        %v218 = vld [vmem:[#allocation5 + $0x90] sm:$0xff]
        %v219 = vld [vmem:[#allocation5 + $0x98] sm:$0xff]
        %v220 = vld [vmem:[#allocation5 + $0xa0] sm:$0xff]
        %v221 = vld [vmem:[#allocation5 + $0xa8] sm:$0xff]
        %v222 = vld [vmem:[#allocation5 + $0xb0] sm:$0xff]
        %v223 = vld [vmem:[#allocation5 + $0xb8] sm:$0xff]
        %v224 = vld [vmem:[#allocation5 + $0xc0] sm:$0xff]
        %v225 = vld [vmem:[#allocation5 + $0xc8] sm:$0xff]
        %v226 = vld [vmem:[#allocation5 + $0xd0] sm:$0xff]
        %v227 = vld [vmem:[#allocation5 + $0xd8] sm:$0xff]
        %v228 = vld [vmem:[#allocation5 + $0xe0] sm:$0xff]
        %v229 = vld [vmem:[#allocation5 + $0xe8] sm:$0xff]
        %v230 = vld [vmem:[#allocation5 + $0xf0] sm:$0xff]
        %v231 = vld [vmem:[#allocation5 + $0xf8] sm:$0xff]
        %232 = vmatpush.msra.mxu0 %v215
        %233 = vmatpush.msra.mxu0 %v214
        %234 = vmatpush.msra.mxu0 %v213
        %235 = vmatpush.msra.mxu0 %v212
        %236 = vmatpush.msra.mxu0 %v211
        %237 = vmatpush.msra.mxu0 %v210
        %238 = vmatpush.msra.mxu0 %v209
        %239 = vmatpush.msra.mxu0 %v208
        %240 = vmatpush.msra.mxu0 %v207
        %241 = vmatpush.msra.mxu0 %v206
        %242 = vmatpush.msra.mxu0 %v205
        %243 = vmatpush.msra.mxu0 %v204
        %244 = vmatpush.msra.mxu0 %v203
        %245 = vmatpush.msra.mxu0 %v202
        %246 = vmatpush.msra.mxu0 %v201
        %247 = vmatpush.msra.mxu0 %v200
        %248 = vmatmul.f32.gmra.mxu0 %v184
        %v249 = vpop.f32.mrf.mxu0
        %v250 = vadd.f32 0.0, %v249
        %251 = vmatmul.f32.gmra.mxu0 %v186
        %v252 = vpop.f32.mrf.mxu0
        %v253 = vadd.f32 0.0, %v252
        %254 = vmatmul.f32.gmra.mxu0 %v188
        %v255 = vpop.f32.mrf.mxu0
        %v256 = vadd.f32 0.0, %v255
        %257 = vmatmul.f32.gmra.mxu0 %v190
        %v258 = vpop.f32.mrf.mxu0
        %v259 = vadd.f32 0.0, %v258
        %260 = vmatmul.f32.gmra.mxu0 %v192
        %v261 = vpop.f32.mrf.mxu0
        %v262 = vadd.f32 0.0, %v261
        %263 = vmatmul.f32.gmra.mxu0 %v194
        %v264 = vpop.f32.mrf.mxu0
        %v265 = vadd.f32 0.0, %v264
        %266 = vmatmul.f32.gmra.mxu0 %v196
        %v267 = vpop.f32.mrf.mxu0
        %v268 = vadd.f32 0.0, %v267
        %269 = vmatmul.f32.gmra.mxu0 %v198
        %v270 = vpop.f32.mrf.mxu0
        %v271 = vadd.f32 0.0, %v270
        %272 = vdwg.mxu0
        %273 = vmatpush.msra.mxu0 %v231
        %274 = vmatpush.msra.mxu0 %v230
        %275 = vmatpush.msra.mxu0 %v229
        %276 = vmatpush.msra.mxu0 %v228
        %277 = vmatpush.msra.mxu0 %v227
        %278 = vmatpush.msra.mxu0 %v226
        %279 = vmatpush.msra.mxu0 %v225
        %280 = vmatpush.msra.mxu0 %v224
        %281 = vmatpush.msra.mxu0 %v223
        %282 = vmatpush.msra.mxu0 %v222
        %283 = vmatpush.msra.mxu0 %v221
        %284 = vmatpush.msra.mxu0 %v220
        %285 = vmatpush.msra.mxu0 %v219
        %286 = vmatpush.msra.mxu0 %v218
        %287 = vmatpush.msra.mxu0 %v217
        %288 = vmatpush.msra.mxu0 %v216
        %289 = vmatmul.f32.gmra.mxu0 %v185
        %v290 = vpop.f32.mrf.mxu0
        %v291 = vadd.f32 %v250, %v290
        %292 = vmatmul.f32.gmra.mxu0 %v187
        %v293 = vpop.f32.mrf.mxu0
        %v294 = vadd.f32 %v253, %v293
        %295 = vmatmul.f32.gmra.mxu0 %v189
        %v296 = vpop.f32.mrf.mxu0
        %v297 = vadd.f32 %v256, %v296
        %298 = vmatmul.f32.gmra.mxu0 %v191
        %v299 = vpop.f32.mrf.mxu0
        %v300 = vadd.f32 %v259, %v299
        %301 = vmatmul.f32.gmra.mxu0 %v193
        %v302 = vpop.f32.mrf.mxu0
        %v303 = vadd.f32 %v262, %v302
        %304 = vmatmul.f32.gmra.mxu0 %v195
        %v305 = vpop.f32.mrf.mxu0
        %v306 = vadd.f32 %v265, %v305
        %307 = vmatmul.f32.gmra.mxu0 %v197
        %v308 = vpop.f32.mrf.mxu0
        %v309 = vadd.f32 %v268, %v308
        %310 = vmatmul.f32.gmra.mxu0 %v199
        %v311 = vpop.f32.mrf.mxu0
        %v312 = vadd.f32 %v271, %v311
        %313 = vdwg.mxu0
        %v314 = vadd.f32 %v184, %v185
        %315 = vadd.xlane.f32.xlu0 %v314
        %v316 = vpop.xlane.xlu0 %315
        %v317 = vadd.f32 %v186, %v187
        %318 = vadd.xlane.f32.xlu0 %v317
        %v319 = vpop.xlane.xlu0 %318
        %v320 = vadd.f32 %v188, %v189
        %321 = vadd.xlane.f32.xlu0 %v320
        %v322 = vpop.xlane.xlu0 %321
        %v323 = vadd.f32 %v190, %v191
        %324 = vadd.xlane.f32.xlu0 %v323
        %v325 = vpop.xlane.xlu0 %324
        %v326 = vadd.f32 %v192, %v193
        %327 = vadd.xlane.f32.xlu0 %v326
        %v328 = vpop.xlane.xlu0 %327
        %v329 = vadd.f32 %v194, %v195
        %330 = vadd.xlane.f32.xlu0 %v329
        %v331 = vpop.xlane.xlu0 %330
        %v332 = vadd.f32 %v196, %v197
        %333 = vadd.xlane.f32.xlu0 %v332
        %v334 = vpop.xlane.xlu0 %333
        %v335 = vadd.f32 %v198, %v199
        %336 = vadd.xlane.f32.xlu0 %v335
        %v337 = vpop.xlane.xlu0 %336
        %v338 = vadd.f32 %v316, 1e-06
        %v339 = vadd.f32 %v319, 1e-06
        %v340 = vadd.f32 %v322, 1e-06
        %v341 = vadd.f32 %v325, 1e-06
        %v342 = vadd.f32 %v328, 1e-06
        %v343 = vadd.f32 %v331, 1e-06
        %v344 = vadd.f32 %v334, 1e-06
        %v345 = vadd.f32 %v337, 1e-06
        %v346 = vrcp.pop %v338
        %v347 = vmul.f32 %v338, %v346
        %v348 = vsub.f32 1.0, %v347
        %v349 = vmul.f32 %v346, %v348
        %v350 = vadd.f32 %v346, %v349
        %vm351 = vweird.f32 %v338
        %vm352 = vweird.f32 %v346
        %vm353 = vmor %vm351, %vm352
        %v354 = vsel %vm353, %v346, %v350
        %v355 = vand.u32 2147483647, %v338
        %vm356 = vcmp.eq.f32.partialorder %v355, 8.507059e+37
        %v357 = vand.u32 %v338, 2147483648
        %v358 = vor.u32 1.1754944e-38, %v357
        %v359 = vsel %vm356, %v358, %v354
        %v360 = vrcp.pop %v339
        %v361 = vmul.f32 %v339, %v360
        %v362 = vsub.f32 1.0, %v361
        %v363 = vmul.f32 %v360, %v362
        %v364 = vadd.f32 %v360, %v363
        %vm365 = vweird.f32 %v339
        %vm366 = vweird.f32 %v360
        %vm367 = vmor %vm365, %vm366
        %v368 = vsel %vm367, %v360, %v364
        %v369 = vand.u32 2147483647, %v339
        %vm370 = vcmp.eq.f32.partialorder %v369, 8.507059e+37
        %v371 = vand.u32 %v339, 2147483648
        %v372 = vor.u32 1.1754944e-38, %v371
        %v373 = vsel %vm370, %v372, %v368
        %v374 = vrcp.pop %v340
        %v375 = vmul.f32 %v340, %v374
        %v376 = vsub.f32 1.0, %v375
        %v377 = vmul.f32 %v374, %v376
        %v378 = vadd.f32 %v374, %v377
        %vm379 = vweird.f32 %v340
        %vm380 = vweird.f32 %v374
        %vm381 = vmor %vm379, %vm380
        %v382 = vsel %vm381, %v374, %v378
        %v383 = vand.u32 2147483647, %v340
        %vm384 = vcmp.eq.f32.partialorder %v383, 8.507059e+37
        %v385 = vand.u32 %v340, 2147483648
        %v386 = vor.u32 1.1754944e-38, %v385
        %v387 = vsel %vm384, %v386, %v382
        %v388 = vrcp.pop %v341
        %v389 = vmul.f32 %v341, %v388
        %v390 = vsub.f32 1.0, %v389
        %v391 = vmul.f32 %v388, %v390
        %v392 = vadd.f32 %v388, %v391
        %vm393 = vweird.f32 %v341
        %vm394 = vweird.f32 %v388
        %vm395 = vmor %vm393, %vm394
        %v396 = vsel %vm395, %v388, %v392
        %v397 = vand.u32 2147483647, %v341
        %vm398 = vcmp.eq.f32.partialorder %v397, 8.507059e+37
        %v399 = vand.u32 %v341, 2147483648
        %v400 = vor.u32 1.1754944e-38, %v399
        %v401 = vsel %vm398, %v400, %v396
        %v402 = vrcp.pop %v342
        %v403 = vmul.f32 %v342, %v402
        %v404 = vsub.f32 1.0, %v403
        %v405 = vmul.f32 %v402, %v404
        %v406 = vadd.f32 %v402, %v405
        %vm407 = vweird.f32 %v342
        %vm408 = vweird.f32 %v402
        %vm409 = vmor %vm407, %vm408
        %v410 = vsel %vm409, %v402, %v406
        %v411 = vand.u32 2147483647, %v342
        %vm412 = vcmp.eq.f32.partialorder %v411, 8.507059e+37
        %v413 = vand.u32 %v342, 2147483648
        %v414 = vor.u32 1.1754944e-38, %v413
        %v415 = vsel %vm412, %v414, %v410
        %v416 = vrcp.pop %v343
        %v417 = vmul.f32 %v343, %v416
        %v418 = vsub.f32 1.0, %v417
        %v419 = vmul.f32 %v416, %v418
        %v420 = vadd.f32 %v416, %v419
        %vm421 = vweird.f32 %v343
        %vm422 = vweird.f32 %v416
        %vm423 = vmor %vm421, %vm422
        %v424 = vsel %vm423, %v416, %v420
        %v425 = vand.u32 2147483647, %v343
        %vm426 = vcmp.eq.f32.partialorder %v425, 8.507059e+37
        %v427 = vand.u32 %v343, 2147483648
        %v428 = vor.u32 1.1754944e-38, %v427
        %v429 = vsel %vm426, %v428, %v424
        %v430 = vrcp.pop %v344
        %v431 = vmul.f32 %v344, %v430
        %v432 = vsub.f32 1.0, %v431
        %v433 = vmul.f32 %v430, %v432
        %v434 = vadd.f32 %v430, %v433
        %vm435 = vweird.f32 %v344
        %vm436 = vweird.f32 %v430
        %vm437 = vmor %vm435, %vm436
        %v438 = vsel %vm437, %v430, %v434
        %v439 = vand.u32 2147483647, %v344
        %vm440 = vcmp.eq.f32.partialorder %v439, 8.507059e+37
        %v441 = vand.u32 %v344, 2147483648
        %v442 = vor.u32 1.1754944e-38, %v441
        %v443 = vsel %vm440, %v442, %v438
        %v444 = vrcp.pop %v345
        %v445 = vmul.f32 %v345, %v444
        %v446 = vsub.f32 1.0, %v445
        %v447 = vmul.f32 %v444, %v446
        %v448 = vadd.f32 %v444, %v447
        %vm449 = vweird.f32 %v345
        %vm450 = vweird.f32 %v444
        %vm451 = vmor %vm449, %vm450
        %v452 = vsel %vm451, %v444, %v448
        %v453 = vand.u32 2147483647, %v345
        %vm454 = vcmp.eq.f32.partialorder %v453, 8.507059e+37
        %v455 = vand.u32 %v345, 2147483648
        %v456 = vor.u32 1.1754944e-38, %v455
        %v457 = vsel %vm454, %v456, %v452
        %v458 = vmul.f32 %v291, %v359
        %v459 = vmul.f32 %v294, %v373
        %v460 = vmul.f32 %v297, %v387
        %v461 = vmul.f32 %v300, %v401
        %v462 = vmul.f32 %v303, %v415
        %v463 = vmul.f32 %v306, %v429
        %v464 = vmul.f32 %v309, %v443
        %v465 = vmul.f32 %v312, %v457
        %466 = vst [vmem:[%s181] sm:$0xff] %v458
        %467 = vst [vmem:[%s181 + $0x8] sm:$0xff] %v459
        %468 = vst [vmem:[%s181 + $0x10] sm:$0xff] %v460
        %469 = vst [vmem:[%s181 + $0x18] sm:$0xff] %v461
        %470 = vst [vmem:[%s181 + $0x20] sm:$0xff] %v462
        %471 = vst [vmem:[%s181 + $0x28] sm:$0xff] %v463
        %472 = vst [vmem:[%s181 + $0x30] sm:$0xff] %v464
        %473 = vst [vmem:[%s181 + $0x38] sm:$0xff] %v465
        %s474 = sand.u32 %s75, 1
        %s475 = scalar_lea.sflag [#allocation4], %s474
        %s476 = sand.u32 %s75, 1
        %s477 = smul.addr %s476, 64
        %s478 = scalar_lea.vmem [#allocation7], %s477
        // Predicated region
        $region37: #{tpu_custom_call.1} parent=27 // pred_check
          %p479 = pneg %p85
        $region38: #{tpu_custom_call.1} parent=27 // pred_check_branch
          %481 = sbr.rel (%p479) target = $region40
        $region39: #{tpu_custom_call.1} parent=27 // pred_region
          %s482 = smul.u32 8, %s20
          %484 = vsyncadd %s475, 0
          %s485 = smul.addr %s482, 8
          %s486 = scalar_lea.hbm %s2, %s485
          %s487 = sshll.u32 %s478, 4
          %s488 = int_to_ptr.vmem [resolvable:$true] %s487
          %s489 = sshll.u32 %s486, 4
          %s490 = int_to_ptr.hbm [resolvable:$true] %s489
          %495 = dma.vmem_to_hbm [thread:$0]  %s488, 1024, %s490, %s475, 128, 128, 8
        $region40: #{tpu_custom_call.1} parent=27 // pred_fallthru
          _
      $region28: #{tpu_custom_call.1} parent=5 // pred_fallthru
        _
      %p496 = scmp.le.s32.totalorder 2, %s15
      // Predicated region
      $region41: #{tpu_custom_call.1} parent=5 // pred_check
        %p497 = pneg %p496
      $region42: #{tpu_custom_call.1} parent=5 // pred_check_branch
        %499 = sbr.rel (%p497) target = $region44
      $region43: #{tpu_custom_call.1} parent=5 // pred_region
        %s500 = ssub.s32 %s15, 2
        // Predicated region
        $region45: #{tpu_custom_call.1} parent=43 // pred_check
          %p501 = pneg %p91
        $region46: #{tpu_custom_call.1} parent=43 // pred_check_branch
          %503 = sbr.rel (%p501) target = $region48
        $region47: #{tpu_custom_call.1} parent=43 // pred_region
          %s504 = sand.u32 %s76, 1
          %s505 = scalar_lea.sflag [#allocation4], %s504
          %s506 = sand.u32 %s76, 1
          %s507 = smul.addr %s506, 64
          %s508 = scalar_lea.vmem [#allocation7], %s507
          %510 = dma.done %s505, 1024
        $region48: #{tpu_custom_call.1} parent=43 // pred_fallthru
          _
      $region44: #{tpu_custom_call.1} parent=5 // pred_fallthru
        _
    $region6: #{tpu_custom_call.1} parent=1 // loop_footer
      %s19 = sadd.s32 1, %s15
    $region7: #{tpu_custom_call.1} parent=1 // loop_footer_branch
      %14 = sbr.rel target = $region3
    $region8: #{tpu_custom_call.1} parent=1 // loop_exit
      _
    %511 = vsyncpa [#allocation3], 1
    %s512 = scalar_lea.sflag [#allocation3], 1
    %513 = vsyncpa %s512, 1
    %514 = vsyncpa [#allocation6], 1
    %515 = vsyncpa [#allocation4], 1
    %s516 = scalar_lea.sflag [#allocation4], 1
    %517 = vsyncpa %s516, 1

// kernel: tpu_custom_call.1
$region0: #{tpu_custom_call.1}
  #allocation0 [shape = 'u32[]', space=smem, size = 0x4, offset = 0x4, fixed_abs, tag = 'smem constant byte address 0x4 - core index']
  #allocation1 [shape = 'u32[72,128]{1,0:T(1,128)}', space=vmem, size = 0x9000, scoped, tag = 'internal scratch']
  %s0 = inlined_call_operand.hbm [shape: f32[128,256], index: 0, kind: input, shape index: {}]
  %s1 = inlined_call_operand.hbm [shape: f32[256,128], index: 1, kind: input, shape index: {}]
  %s2 = inlined_call_operand.hbm [shape: f32[128,128], index: 2, kind: output, shape index: {}]
  %s3 = sld [smem:[#allocation0]]
  $region49: #{tpu_custom_call.1} parent=0
    _
  %s5 = ssub.s32 1, %s3
  %s6 = scalar_select 0, %s5, %s3
  $region1: #{tpu_custom_call.1} parent=0
    #allocation2 [shape = 'u8[131072]{0}', space=vmem, size = 0x20000, scoped, tag = 'input window, operand 0']
    #allocation3 [shape = 's32[2]{0}', space=sflag, size = 0x8, scoped, tag = 'scoped memory for tpu_custom_call.1']
    #allocation4 [shape = 's32[2]{0}', space=sflag, size = 0x8, scoped, tag = 'scoped memory for tpu_custom_call.1']
    #allocation5 [shape = 'u8[131072]{0}', space=vmem, size = 0x20000, scoped, tag = 'input window, operand 1, single buffered']
    #allocation6 [shape = 's32[1]{0}', space=sflag, size = 0x4, scoped, tag = 'scoped memory for tpu_custom_call.1']
    #allocation7 [shape = 'u8[65536]{0}', space=vmem, size = 0x10000, scoped, tag = 'output window, operand 0']
    %7 = vsyncpa [#allocation3], 0
    %s8 = scalar_lea.sflag [#allocation3], 1
    %9 = vsyncpa %s8, 0
    %10 = vsyncpa [#allocation6], 0
    %11 = vsyncpa [#allocation4], 0
    %s12 = scalar_lea.sflag [#allocation4], 1
    %13 = vsyncpa %s12, 0
    loop: start=0, step=1, limit=4
    $region2: #{tpu_custom_call.1} parent=1 // loop_pre_header
      _
    $region3: #{tpu_custom_call.1} parent=1 // loop_header
      %s15 = sphi 0, %s19
      %p16 = scmp.ge.s32.totalorder %s15, 4
      %s25 = sphi 0, %s27
      %s28 = sphi 0, %s25
      %s29 = sphi 0, %s28
      %s45 = sphi 0, %s29
      %s49 = sphi 0, %s49
      %s51 = sphi 0, %s49
      %s52 = sphi 0, %s51
      %s66 = sphi 0, %s52
      %s72 = sphi 0, %s74
      %s75 = sphi 0, %s72
      %s76 = sphi 0, %s75
      %s92 = sphi 0, %s76
    $region4: #{tpu_custom_call.1} parent=1 // loop_header_branch
      %18 = sbr.rel (%p16) target = $region8
    $region5: #{tpu_custom_call.1} parent=1 // loop_body
      %s20 = ssub.s32 %s15, 1
      %s21 = ssub.s32 %s15, 2
      %s22 = sadd.s32 %s15, 1
      %s23 = ssub.s32 %s15, %s22
      %p24 = scmp.eq.s32.totalorder %s23, 0
      %s26 = sadd.s32 %s25, 1
      %s27 = scalar_select %p24, %s25, %s26
      %p30 = pneg %p24
      %p31 = scmp.eq.s32.totalorder %s15, 1
      %p32 = por %p30, %p31
      %p33 = scmp.ne.s32.totalorder %s25, %s28
      %p34 = scmp.eq.s32.totalorder %s15, 0
      %p35 = por %p33, %p34
      %p36 = scmp.ne.s32.totalorder %s25, %s28
      %p37 = scmp.eq.s32.totalorder %s20, 1
      %p38 = por %p36, %p37
      %p39 = scmp.ne.s32.totalorder %s28, %s29
      %p40 = scmp.eq.s32.totalorder %s20, 0
      %p41 = por %p39, %p40
      %p42 = scmp.ne.s32.totalorder %s28, %s29
      %p43 = scmp.eq.s32.totalorder %s21, 1
      %p44 = por %p42, %p43
      %p46 = scmp.ne.s32.totalorder %s29, %s45
      %p47 = scmp.eq.s32.totalorder %s21, 0
      %p48 = por %p46, %p47
      %s50 = sadd.s32 %s49, 1
      %p53 = scmp.eq.s32.totalorder %s15, 1
      %p54 = scmp.ne.s32.totalorder %s49, %s51
      %p55 = scmp.eq.s32.totalorder %s15, 0
      %p56 = por %p54, %p55
      %p57 = scmp.ne.s32.totalorder %s49, %s51
      %p58 = scmp.eq.s32.totalorder %s20, 1
      %p59 = por %p57, %p58
      %p60 = scmp.ne.s32.totalorder %s51, %s52
      %p61 = scmp.eq.s32.totalorder %s20, 0
      %p62 = por %p60, %p61
      %p63 = scmp.ne.s32.totalorder %s51, %s52
      %p64 = scmp.eq.s32.totalorder %s21, 1
      %p65 = por %p63, %p64
      %p67 = scmp.ne.s32.totalorder %s52, %s66
      %p68 = scmp.eq.s32.totalorder %s21, 0
      %p69 = por %p67, %p68
      %s70 = ssub.s32 %s15, %s22
      %p71 = scmp.eq.s32.totalorder %s70, 0
      %s73 = sadd.s32 %s72, 1
      %s74 = scalar_select %p71, %s72, %s73
      %p77 = pneg %p71
      %p78 = scmp.eq.s32.totalorder %s15, 1
      %p79 = por %p77, %p78
      %p80 = scmp.ne.s32.totalorder %s72, %s75
      %p81 = scmp.eq.s32.totalorder %s15, 0
      %p82 = por %p80, %p81
      %p83 = scmp.ne.s32.totalorder %s72, %s75
      %p84 = scmp.eq.s32.totalorder %s20, 1
      %p85 = por %p83, %p84
      %p86 = scmp.ne.s32.totalorder %s75, %s76
      %p87 = scmp.eq.s32.totalorder %s20, 0
      %p88 = por %p86, %p87
      %p89 = scmp.ne.s32.totalorder %s75, %s76
      %p90 = scmp.eq.s32.totalorder %s21, 1
      %p91 = por %p89, %p90
      %p93 = scmp.ne.s32.totalorder %s76, %s92
      %p94 = scmp.eq.s32.totalorder %s21, 0
      %p95 = por %p93, %p94
      %p96 = scmp.le.s32.totalorder 1, %s15
      %p97 = scmp.lt.s32.totalorder %s15, 3
      %p98 = pnand %p96, %p97
      %p99 = pneg %p98
      // Predicated region
      $region9: #{tpu_custom_call.1} parent=5 // pred_check
        _
      $region10: #{tpu_custom_call.1} parent=5 // pred_check_branch
        %101 = sbr.rel (%p98) target = $region12
      $region11: #{tpu_custom_call.1} parent=5 // pred_region
        %s102 = ssub.s32 %s15, 1
        // Predicated region
        $region13: #{tpu_custom_call.1} parent=11 // pred_check
          %p103 = pneg %p62
        $region14: #{tpu_custom_call.1} parent=11 // pred_check_branch
          %105 = sbr.rel (%p103) target = $region16
        $region15: #{tpu_custom_call.1} parent=11 // pred_region
          %107 = vsyncadd [#allocation6], 0
          %s108 = sshll.u32 %s1, 4
          %s109 = int_to_ptr.hbm [resolvable:$true] %s108
          %s110 = sshll.u32 [#allocation5], 4
          %s111 = int_to_ptr.vmem [resolvable:$true] %s110
          %116 = dma.hbm_to_vmem [thread:$0]  %s109, 4096, %s111, [#allocation6], 128, 128, 8
        $region16: #{tpu_custom_call.1} parent=11 // pred_fallthru
          _
      $region12: #{tpu_custom_call.1} parent=5 // pred_fallthru
        _
      %p117 = scmp.lt.s32.totalorder %s15, 2
      // Predicated region
      $region17: #{tpu_custom_call.1} parent=5 // pred_check
        %p118 = pneg %p117
      $region18: #{tpu_custom_call.1} parent=5 // pred_check_branch
        %120 = sbr.rel (%p118) target = $region20
      $region19: #{tpu_custom_call.1} parent=5 // pred_region
        // Predicated region
        $region21: #{tpu_custom_call.1} parent=19 // pred_check
          %p121 = pneg %p35
        $region22: #{tpu_custom_call.1} parent=19 // pred_check_branch
          %123 = sbr.rel (%p121) target = $region24
        $region23: #{tpu_custom_call.1} parent=19 // pred_region
          %s124 = sand.u32 %s25, 1
          %s125 = scalar_lea.sflag [#allocation3], %s124
          %s126 = sand.u32 %s25, 1
          %s127 = smul.addr %s126, 128
          %s128 = scalar_lea.vmem [#allocation2], %s127
          %s129 = smul.u32 8, %s15
          %131 = vsyncadd %s125, 0
          %s132 = smul.addr %s129, 2
          %s133 = smul.addr %s132, 8
          %s134 = scalar_lea.hbm %s0, %s133
          %s135 = sshll.u32 %s134, 4
          %s136 = int_to_ptr.hbm [resolvable:$true] %s135
          %s137 = sshll.u32 %s128, 4
          %s138 = int_to_ptr.vmem [resolvable:$true] %s137
          %143 = dma.hbm_to_vmem [thread:$0]  %s136, 2048, %s138, %s125, 256, 256, 16
        $region24: #{tpu_custom_call.1} parent=19 // pred_fallthru
          _
      $region20: #{tpu_custom_call.1} parent=5 // pred_fallthru
        _
      %p144 = scmp.le.s32.totalorder 1, %s15
      %p145 = scmp.lt.s32.totalorder %s15, 3
      %p146 = pnand %p144, %p145
      %p147 = pneg %p146
      // Predicated region
      $region25: #{tpu_custom_call.1} parent=5 // pred_check
        _
      $region26: #{tpu_custom_call.1} parent=5 // pred_check_branch
        %149 = sbr.rel (%p146) target = $region28
      $region27: #{tpu_custom_call.1} parent=5 // pred_region
        %s150 = ssub.s32 %s15, 1
        %s151 = sand.u32 %s28, 1
        %s152 = scalar_lea.sflag [#allocation3], %s151
        %s153 = sand.u32 %s28, 1
        %s154 = smul.addr %s153, 128
        %s155 = scalar_lea.vmem [#allocation2], %s154
        // Predicated region
        $region29: #{tpu_custom_call.1} parent=27 // pred_check
          %p156 = pneg %p41
        $region30: #{tpu_custom_call.1} parent=27 // pred_check_branch
          %158 = sbr.rel (%p156) target = $region32
        $region31: #{tpu_custom_call.1} parent=27 // pred_region
          %160 = dma.done %s152, 2048
        $region32: #{tpu_custom_call.1} parent=27 // pred_fallthru
          _
        // Predicated region
        $region33: #{tpu_custom_call.1} parent=27 // pred_check
          %p161 = pneg %p62
        $region34: #{tpu_custom_call.1} parent=27 // pred_check_branch
          %163 = sbr.rel (%p161) target = $region36
        $region35: #{tpu_custom_call.1} parent=27 // pred_region
          %165 = dma.done [#allocation6], 4096
        $region36: #{tpu_custom_call.1} parent=27 // pred_fallthru
          _
        %s166 = sand.u32 %s28, 1
        %s167 = scalar_lea.sflag [#allocation3], %s166
        %s168 = sand.u32 %s28, 1
        %s169 = smul.addr %s168, 128
        %s170 = scalar_lea.vmem [#allocation2], %s169
        %p171 = pneg %p41
        %p172 = pneg %p38
        %p173 = pneg %p62
        %p174 = pneg %p59
        %p175 = pneg %p88
        %p176 = pneg %p85
        %s177 = sand.u32 %s75, 1
        %s178 = scalar_lea.sflag [#allocation4], %s177
        %s179 = sand.u32 %s75, 1
        %s180 = smul.addr %s179, 64
        %s181 = scalar_lea.vmem [#allocation7], %s180
        %s182 = smul.u32 8, %s20
        %s183 = smul.u32 8, %s20
        %v184 = vld [vmem:[%s155] sm:$0xff]
        %v185 = vld [vmem:[%s155 + $0x8] sm:$0xff]
        %v186 = vld [vmem:[%s155 + $0x10] sm:$0xff]
        %v187 = vld [vmem:[%s155 + $0x18] sm:$0xff]
        %v188 = vld [vmem:[%s155 + $0x20] sm:$0xff]
        %v189 = vld [vmem:[%s155 + $0x28] sm:$0xff]
        %v190 = vld [vmem:[%s155 + $0x30] sm:$0xff]
        %v191 = vld [vmem:[%s155 + $0x38] sm:$0xff]
        %v192 = vld [vmem:[%s155 + $0x40] sm:$0xff]
        %v193 = vld [vmem:[%s155 + $0x48] sm:$0xff]
        %v194 = vld [vmem:[%s155 + $0x50] sm:$0xff]
        %v195 = vld [vmem:[%s155 + $0x58] sm:$0xff]
        %v196 = vld [vmem:[%s155 + $0x60] sm:$0xff]
        %v197 = vld [vmem:[%s155 + $0x68] sm:$0xff]
        %v198 = vld [vmem:[%s155 + $0x70] sm:$0xff]
        %v199 = vld [vmem:[%s155 + $0x78] sm:$0xff]
        %v200 = vld [vmem:[#allocation5] sm:$0xff]
        %v201 = vld [vmem:[#allocation5 + $0x8] sm:$0xff]
        %v202 = vld [vmem:[#allocation5 + $0x10] sm:$0xff]
        %v203 = vld [vmem:[#allocation5 + $0x18] sm:$0xff]
        %v204 = vld [vmem:[#allocation5 + $0x20] sm:$0xff]
        %v205 = vld [vmem:[#allocation5 + $0x28] sm:$0xff]
        %v206 = vld [vmem:[#allocation5 + $0x30] sm:$0xff]
        %v207 = vld [vmem:[#allocation5 + $0x38] sm:$0xff]
        %v208 = vld [vmem:[#allocation5 + $0x40] sm:$0xff]
        %v209 = vld [vmem:[#allocation5 + $0x48] sm:$0xff]
        %v210 = vld [vmem:[#allocation5 + $0x50] sm:$0xff]
        %v211 = vld [vmem:[#allocation5 + $0x58] sm:$0xff]
        %v212 = vld [vmem:[#allocation5 + $0x60] sm:$0xff]
        %v213 = vld [vmem:[#allocation5 + $0x68] sm:$0xff]
        %v214 = vld [vmem:[#allocation5 + $0x70] sm:$0xff]
        %v215 = vld [vmem:[#allocation5 + $0x78] sm:$0xff]
        %v216 = vld [vmem:[#allocation5 + $0x80] sm:$0xff]
        %v217 = vld [vmem:[#allocation5 + $0x88] sm:$0xff]
        %v218 = vld [vmem:[#allocation5 + $0x90] sm:$0xff]
        %v219 = vld [vmem:[#allocation5 + $0x98] sm:$0xff]
        %v220 = vld [vmem:[#allocation5 + $0xa0] sm:$0xff]
        %v221 = vld [vmem:[#allocation5 + $0xa8] sm:$0xff]
        %v222 = vld [vmem:[#allocation5 + $0xb0] sm:$0xff]
        %v223 = vld [vmem:[#allocation5 + $0xb8] sm:$0xff]
        %v224 = vld [vmem:[#allocation5 + $0xc0] sm:$0xff]
        %v225 = vld [vmem:[#allocation5 + $0xc8] sm:$0xff]
        %v226 = vld [vmem:[#allocation5 + $0xd0] sm:$0xff]
        %v227 = vld [vmem:[#allocation5 + $0xd8] sm:$0xff]
        %v228 = vld [vmem:[#allocation5 + $0xe0] sm:$0xff]
        %v229 = vld [vmem:[#allocation5 + $0xe8] sm:$0xff]
        %v230 = vld [vmem:[#allocation5 + $0xf0] sm:$0xff]
        %v231 = vld [vmem:[#allocation5 + $0xf8] sm:$0xff]
        %232 = vmatpush.msra.mxu0 %v215
        %233 = vmatpush.msra.mxu0 %v214
        %234 = vmatpush.msra.mxu0 %v213
        %235 = vmatpush.msra.mxu0 %v212
        %236 = vmatpush.msra.mxu0 %v211
        %237 = vmatpush.msra.mxu0 %v210
        %238 = vmatpush.msra.mxu0 %v209
        %239 = vmatpush.msra.mxu0 %v208
        %240 = vmatpush.msra.mxu0 %v207
        %241 = vmatpush.msra.mxu0 %v206
        %242 = vmatpush.msra.mxu0 %v205
        %243 = vmatpush.msra.mxu0 %v204
        %244 = vmatpush.msra.mxu0 %v203
        %245 = vmatpush.msra.mxu0 %v202
        %246 = vmatpush.msra.mxu0 %v201
        %247 = vmatpush.msra.mxu0 %v200
        %248 = vmatmul.f32.gmra.mxu0 %v184
        %v249 = vpop.f32.mrf.mxu0
        %v250 = vadd.f32 0.0, %v249
        %251 = vmatmul.f32.gmra.mxu0 %v186
        %v252 = vpop.f32.mrf.mxu0
        %v253 = vadd.f32 0.0, %v252
        %254 = vmatmul.f32.gmra.mxu0 %v188
        %v255 = vpop.f32.mrf.mxu0
        %v256 = vadd.f32 0.0, %v255
        %257 = vmatmul.f32.gmra.mxu0 %v190
        %v258 = vpop.f32.mrf.mxu0
        %v259 = vadd.f32 0.0, %v258
        %260 = vmatmul.f32.gmra.mxu0 %v192
        %v261 = vpop.f32.mrf.mxu0
        %v262 = vadd.f32 0.0, %v261
        %263 = vmatmul.f32.gmra.mxu0 %v194
        %v264 = vpop.f32.mrf.mxu0
        %v265 = vadd.f32 0.0, %v264
        %266 = vmatmul.f32.gmra.mxu0 %v196
        %v267 = vpop.f32.mrf.mxu0
        %v268 = vadd.f32 0.0, %v267
        %269 = vmatmul.f32.gmra.mxu0 %v198
        %v270 = vpop.f32.mrf.mxu0
        %v271 = vadd.f32 0.0, %v270
        %272 = vdwg.mxu0
        %273 = vmatpush.msra.mxu0 %v231
        %274 = vmatpush.msra.mxu0 %v230
        %275 = vmatpush.msra.mxu0 %v229
        %276 = vmatpush.msra.mxu0 %v228
        %277 = vmatpush.msra.mxu0 %v227
        %278 = vmatpush.msra.mxu0 %v226
        %279 = vmatpush.msra.mxu0 %v225
        %280 = vmatpush.msra.mxu0 %v224
        %281 = vmatpush.msra.mxu0 %v223
        %282 = vmatpush.msra.mxu0 %v222
        %283 = vmatpush.msra.mxu0 %v221
        %284 = vmatpush.msra.mxu0 %v220
        %285 = vmatpush.msra.mxu0 %v219
        %286 = vmatpush.msra.mxu0 %v218
        %287 = vmatpush.msra.mxu0 %v217
        %288 = vmatpush.msra.mxu0 %v216
        %289 = vmatmul.f32.gmra.mxu0 %v185
        %v290 = vpop.f32.mrf.mxu0
        %v291 = vadd.f32 %v250, %v290
        %292 = vmatmul.f32.gmra.mxu0 %v187
        %v293 = vpop.f32.mrf.mxu0
        %v294 = vadd.f32 %v253, %v293
        %295 = vmatmul.f32.gmra.mxu0 %v189
        %v296 = vpop.f32.mrf.mxu0
        %v297 = vadd.f32 %v256, %v296
        %298 = vmatmul.f32.gmra.mxu0 %v191
        %v299 = vpop.f32.mrf.mxu0
        %v300 = vadd.f32 %v259, %v299
        %301 = vmatmul.f32.gmra.mxu0 %v193
        %v302 = vpop.f32.mrf.mxu0
        %v303 = vadd.f32 %v262, %v302
        %304 = vmatmul.f32.gmra.mxu0 %v195
        %v305 = vpop.f32.mrf.mxu0
        %v306 = vadd.f32 %v265, %v305
        %307 = vmatmul.f32.gmra.mxu0 %v197
        %v308 = vpop.f32.mrf.mxu0
        %v309 = vadd.f32 %v268, %v308
        %310 = vmatmul.f32.gmra.mxu0 %v199
        %v311 = vpop.f32.mrf.mxu0
        %v312 = vadd.f32 %v271, %v311
        %313 = vdwg.mxu0
        %v314 = vadd.f32 %v184, %v185
        %315 = vadd.xlane.f32.xlu0 %v314
        %v316 = vpop.xlane.xlu0 %315
        %v317 = vadd.f32 %v186, %v187
        %318 = vadd.xlane.f32.xlu0 %v317
        %v319 = vpop.xlane.xlu0 %318
        %v320 = vadd.f32 %v188, %v189
        %321 = vadd.xlane.f32.xlu0 %v320
        %v322 = vpop.xlane.xlu0 %321
        %v323 = vadd.f32 %v190, %v191
        %324 = vadd.xlane.f32.xlu0 %v323
        %v325 = vpop.xlane.xlu0 %324
        %v326 = vadd.f32 %v192, %v193
        %327 = vadd.xlane.f32.xlu0 %v326
        %v328 = vpop.xlane.xlu0 %327
        %v329 = vadd.f32 %v194, %v195
        %330 = vadd.xlane.f32.xlu0 %v329
        %v331 = vpop.xlane.xlu0 %330
        %v332 = vadd.f32 %v196, %v197
        %333 = vadd.xlane.f32.xlu0 %v332
        %v334 = vpop.xlane.xlu0 %333
        %v335 = vadd.f32 %v198, %v199
        %336 = vadd.xlane.f32.xlu0 %v335
        %v337 = vpop.xlane.xlu0 %336
        %v338 = vadd.f32 %v316, 1e-06
        %v339 = vadd.f32 %v319, 1e-06
        %v340 = vadd.f32 %v322, 1e-06
        %v341 = vadd.f32 %v325, 1e-06
        %v342 = vadd.f32 %v328, 1e-06
        %v343 = vadd.f32 %v331, 1e-06
        %v344 = vadd.f32 %v334, 1e-06
        %v345 = vadd.f32 %v337, 1e-06
        %v346 = vrcp.pop %v338
        %v347 = vmul.f32 %v338, %v346
        %v348 = vsub.f32 1.0, %v347
        %v349 = vmul.f32 %v346, %v348
        %v350 = vadd.f32 %v346, %v349
        %vm351 = vweird.f32 %v338
        %vm352 = vweird.f32 %v346
        %vm353 = vmor %vm351, %vm352
        %v354 = vsel %vm353, %v346, %v350
        %v355 = vand.u32 2147483647, %v338
        %vm356 = vcmp.eq.f32.partialorder %v355, 8.507059e+37
        %v357 = vand.u32 %v338, 2147483648
        %v358 = vor.u32 1.1754944e-38, %v357
        %v359 = vsel %vm356, %v358, %v354
        %v360 = vrcp.pop %v339
        %v361 = vmul.f32 %v339, %v360
        %v362 = vsub.f32 1.0, %v361
        %v363 = vmul.f32 %v360, %v362
        %v364 = vadd.f32 %v360, %v363
        %vm365 = vweird.f32 %v339
        %vm366 = vweird.f32 %v360
        %vm367 = vmor %vm365, %vm366
        %v368 = vsel %vm367, %v360, %v364
        %v369 = vand.u32 2147483647, %v339
        %vm370 = vcmp.eq.f32.partialorder %v369, 8.507059e+37
        %v371 = vand.u32 %v339, 2147483648
        %v372 = vor.u32 1.1754944e-38, %v371
        %v373 = vsel %vm370, %v372, %v368
        %v374 = vrcp.pop %v340
        %v375 = vmul.f32 %v340, %v374
        %v376 = vsub.f32 1.0, %v375
        %v377 = vmul.f32 %v374, %v376
        %v378 = vadd.f32 %v374, %v377
        %vm379 = vweird.f32 %v340
        %vm380 = vweird.f32 %v374
        %vm381 = vmor %vm379, %vm380
        %v382 = vsel %vm381, %v374, %v378
        %v383 = vand.u32 2147483647, %v340
        %vm384 = vcmp.eq.f32.partialorder %v383, 8.507059e+37
        %v385 = vand.u32 %v340, 2147483648
        %v386 = vor.u32 1.1754944e-38, %v385
        %v387 = vsel %vm384, %v386, %v382
        %v388 = vrcp.pop %v341
        %v389 = vmul.f32 %v341, %v388
        %v390 = vsub.f32 1.0, %v389
        %v391 = vmul.f32 %v388, %v390
        %v392 = vadd.f32 %v388, %v391
        %vm393 = vweird.f32 %v341
        %vm394 = vweird.f32 %v388
        %vm395 = vmor %vm393, %vm394
        %v396 = vsel %vm395, %v388, %v392
        %v397 = vand.u32 2147483647, %v341
        %vm398 = vcmp.eq.f32.partialorder %v397, 8.507059e+37
        %v399 = vand.u32 %v341, 2147483648
        %v400 = vor.u32 1.1754944e-38, %v399
        %v401 = vsel %vm398, %v400, %v396
        %v402 = vrcp.pop %v342
        %v403 = vmul.f32 %v342, %v402
        %v404 = vsub.f32 1.0, %v403
        %v405 = vmul.f32 %v402, %v404
        %v406 = vadd.f32 %v402, %v405
        %vm407 = vweird.f32 %v342
        %vm408 = vweird.f32 %v402
        %vm409 = vmor %vm407, %vm408
        %v410 = vsel %vm409, %v402, %v406
        %v411 = vand.u32 2147483647, %v342
        %vm412 = vcmp.eq.f32.partialorder %v411, 8.507059e+37
        %v413 = vand.u32 %v342, 2147483648
        %v414 = vor.u32 1.1754944e-38, %v413
        %v415 = vsel %vm412, %v414, %v410
        %v416 = vrcp.pop %v343
        %v417 = vmul.f32 %v343, %v416
        %v418 = vsub.f32 1.0, %v417
        %v419 = vmul.f32 %v416, %v418
        %v420 = vadd.f32 %v416, %v419
        %vm421 = vweird.f32 %v343
        %vm422 = vweird.f32 %v416
        %vm423 = vmor %vm421, %vm422
        %v424 = vsel %vm423, %v416, %v420
        %v425 = vand.u32 2147483647, %v343
        %vm426 = vcmp.eq.f32.partialorder %v425, 8.507059e+37
        %v427 = vand.u32 %v343, 2147483648
        %v428 = vor.u32 1.1754944e-38, %v427
        %v429 = vsel %vm426, %v428, %v424
        %v430 = vrcp.pop %v344
        %v431 = vmul.f32 %v344, %v430
        %v432 = vsub.f32 1.0, %v431
        %v433 = vmul.f32 %v430, %v432
        %v434 = vadd.f32 %v430, %v433
        %vm435 = vweird.f32 %v344
        %vm436 = vweird.f32 %v430
        %vm437 = vmor %vm435, %vm436
        %v438 = vsel %vm437, %v430, %v434
        %v439 = vand.u32 2147483647, %v344
        %vm440 = vcmp.eq.f32.partialorder %v439, 8.507059e+37
        %v441 = vand.u32 %v344, 2147483648
        %v442 = vor.u32 1.1754944e-38, %v441
        %v443 = vsel %vm440, %v442, %v438
        %v444 = vrcp.pop %v345
        %v445 = vmul.f32 %v345, %v444
        %v446 = vsub.f32 1.0, %v445
        %v447 = vmul.f32 %v444, %v446
        %v448 = vadd.f32 %v444, %v447
        %vm449 = vweird.f32 %v345
        %vm450 = vweird.f32 %v444
        %vm451 = vmor %vm449, %vm450
        %v452 = vsel %vm451, %v444, %v448
        %v453 = vand.u32 2147483647, %v345
        %vm454 = vcmp.eq.f32.partialorder %v453, 8.507059e+37
        %v455 = vand.u32 %v345, 2147483648
        %v456 = vor.u32 1.1754944e-38, %v455
        %v457 = vsel %vm454, %v456, %v452
        %v458 = vmul.f32 %v291, %v359
        %v459 = vmul.f32 %v294, %v373
        %v460 = vmul.f32 %v297, %v387
        %v461 = vmul.f32 %v300, %v401
        %v462 = vmul.f32 %v303, %v415
        %v463 = vmul.f32 %v306, %v429
        %v464 = vmul.f32 %v309, %v443
        %v465 = vmul.f32 %v312, %v457
        %466 = vst [vmem:[%s181] sm:$0xff] %v458
        %467 = vst [vmem:[%s181 + $0x8] sm:$0xff] %v459
        %468 = vst [vmem:[%s181 + $0x10] sm:$0xff] %v460
        %469 = vst [vmem:[%s181 + $0x18] sm:$0xff] %v461
        %470 = vst [vmem:[%s181 + $0x20] sm:$0xff] %v462
        %471 = vst [vmem:[%s181 + $0x28] sm:$0xff] %v463
        %472 = vst [vmem:[%s181 + $0x30] sm:$0xff] %v464
        %473 = vst [vmem:[%s181 + $0x38] sm:$0xff] %v465
        %s474 = sand.u32 %s75, 1
        %s475 = scalar_lea.sflag [#allocation4], %s474
        %s476 = sand.u32 %s75, 1
        %s477 = smul.addr %s476, 64
        %s478 = scalar_lea.vmem [#allocation7], %s477
        // Predicated region
        $region37: #{tpu_custom_call.1} parent=27 // pred_check
          %p479 = pneg %p85
        $region38: #{tpu_custom_call.1} parent=27 // pred_check_branch
          %481 = sbr.rel (%p479) target = $region40
        $region39: #{tpu_custom_call.1} parent=27 // pred_region
          %s482 = smul.u32 8, %s20
          %484 = vsyncadd %s475, 0
          %s485 = smul.addr %s482, 8
          %s486 = scalar_lea.hbm %s2, %s485
          %s487 = sshll.u32 %s478, 4
          %s488 = int_to_ptr.vmem [resolvable:$true] %s487
          %s489 = sshll.u32 %s486, 4
          %s490 = int_to_ptr.hbm [resolvable:$true] %s489
          %495 = dma.vmem_to_hbm [thread:$0]  %s488, 1024, %s490, %s475, 128, 128, 8
        $region40: #{tpu_custom_call.1} parent=27 // pred_fallthru
          _
      $region28: #{tpu_custom_call.1} parent=5 // pred_fallthru
        _
      %p496 = scmp.le.s32.totalorder 2, %s15
      // Predicated region
      $region41: #{tpu_custom_call.1} parent=5 // pred_check
        %p497 = pneg %p496
      $region42: #{tpu_custom_call.1} parent=5 // pred_check_branch
        %499 = sbr.rel (%p497) target = $region44
      $region43: #{tpu_custom_call.1} parent=5 // pred_region
        %s500 = ssub.s32 %s15, 2
        // Predicated region
        $region45: #{tpu_custom_call.1} parent=43 // pred_check
          %p501 = pneg %p91
        $region46: #{tpu_custom_call.1} parent=43 // pred_check_branch
          %503 = sbr.rel (%p501) target = $region48
        $region47: #{tpu_custom_call.1} parent=43 // pred_region
          %s504 = sand.u32 %s76, 1
          %s505 = scalar_lea.sflag [#allocation4], %s504
          %s506 = sand.u32 %s76, 1
          %s507 = smul.addr %s506, 64
          %s508 = scalar_lea.vmem [#allocation7], %s507
          %510 = dma.done %s505, 1024
        $region48: #{tpu_custom_call.1} parent=43 // pred_fallthru
          _
      $region44: #{tpu_custom_call.1} parent=5 // pred_fallthru
        _
    $region6: #{tpu_custom_call.1} parent=1 // loop_footer
      %s19 = sadd.s32 1, %s15
    $region7: #{tpu_custom_call.1} parent=1 // loop_footer_branch
      %14 = sbr.rel target = $region3
    $region8: #{tpu_custom_call.1} parent=1 // loop_exit
      _
    %511 = vsyncpa [#allocation3], 1
    %s512 = scalar_lea.sflag [#allocation3], 1
    %513 = vsyncpa %s512, 1
    %514 = vsyncpa [#allocation6], 1
    %515 = vsyncpa [#allocation4], 1
    %s516 = scalar_lea.sflag [#allocation4], 1
    %517 = vsyncpa %s516, 1

</llo_original>
